<compile_context>
chip_gen: v7x
topology: tpu7x:2x2x1
jax: 0.10.0
libtpu: 0.0.40
codegen_flags: <defaults>
</compile_context>

<pallas_src>
import functools

import jax
import jax.numpy as jnp
from jax import lax
from jax.experimental import pallas as pl
from jax.experimental.pallas import tpu as pltpu


def sa_dotatt_kernel(xs_ref, xf_ref, wq_ref, bq_ref, wkv_ref, bkv_ref, out_ref,
                     *, c, cp, hw, hw_pad, tq):
    # xs_ref : (1, CL, tq)      x slab for this query block (for q)
    # xf_ref : (1, CL, hw_pad)  full x for this batch        (for k, v)
    # wq_ref : (Cp, CL)   bq_ref : (Cp, 1)
    # wkv_ref: (2Cp, CL)  bkv_ref: (2Cp, 1)
    # out_ref: (1, C, tq)
    x_slab = xs_ref[0]                                               # (CL, tq)
    x_full = xf_ref[0]                                               # (CL, hw_pad)

    # Fused (proj + 1x1 conv) projections: one small MXU matmul each.
    q = jnp.dot(wq_ref[...], x_slab,
                preferred_element_type=jnp.float32) + bq_ref[...]    # (Cp, tq)
    kv = jnp.dot(wkv_ref[...], x_full,
                 preferred_element_type=jnp.float32) + bkv_ref[...]  # (2Cp, hw_pad)
    k = kv[:cp, :]                                                    # (Cp, hw_pad)
    v = kv[cp:, :]                                                    # (Cp, hw_pad)

    # s[i, j] = sum_c q[c, i] * k[c, j]  -> (tq, hw_pad); only the small (Cp, tq)
    # operand is presented transposed to the MXU.
    s = lax.dot_general(q, k, (((0,), (0,)), ((), ())),
                        preferred_element_type=jnp.float32)           # (tq, hw_pad)
    if hw_pad != hw:
        # Padded KEY columns hold the projection bias, not zeros -> mask them out.
        col = lax.broadcasted_iota(jnp.int32, (tq, hw_pad), 1)
        s = jnp.where(col < hw, s, -jnp.inf)

    s = s - jnp.max(s, axis=-1, keepdims=True)                        # XLU lane reduce
    p = jnp.exp(s)                                                    # EUP
    denom = jnp.sum(p, axis=-1, keepdims=True)                        # (tq, 1)

    # fe^T[i, c] = sum_j p[i, j] * v[c, j]  (un-normalized).
    feT = lax.dot_general(p, v, (((1,), (1,)), ((), ())),
                          preferred_element_type=jnp.float32)         # (tq, Cp)
    # Normalize AFTER the matmul: tq exact divides instead of tq*hw divides.
    feT = feT * (1.0 / denom)

    # Small (tq, Cp) -> (Cp, tq) transpose; store only the real C channels so the
    # output needs no host-side de-pad copy (sublane-masked, lane-dense in HW).
    out_ref[0] = feT.T[:c, :].astype(out_ref.dtype)


def _fuse_params(params, c, cp):
    """Fold proj + the three 1x1 convs into (W_q, b_q, W_kv, b_kv), padded to cp."""
    wp, bp, w1, b1, w2, b2, w3, b3 = params

    def section(wi, bi):
        w = wi @ wp                        # (C, C*L)
        bb = wi @ bp + bi                  # (C,)
        w = jnp.pad(w, ((0, cp - c), (0, 0)))
        bb = jnp.pad(bb, (0, cp - c))
        return w, bb.reshape(cp, 1)

    wq, bq = section(w1, b1)
    wk, bk = section(w2, b2)
    wv, bv = section(w3, b3)
    w_kv = jnp.concatenate([wk, wv], axis=0)   # (2*Cp, C*L)
    b_kv = jnp.concatenate([bk, bv], axis=0)   # (2*Cp, 1)
    return wq, bq, w_kv, b_kv


def sa_dotatt(feats, params):
    """feats: (B, C, L, H, W) float32. Returns feat_e: (B, C, H, W)."""
    b, c, l, h, w = feats.shape
    hw = h * w
    cl = c * l
    cp = ((c + 7) // 8) * 8                    # pad channels to a sublane tile
    tq = 128                                   # fixed query-slab size (lane tile)
    hw_pad = ((hw + tq - 1) // tq) * tq        # pad spatial dim to a lane tile

    x = feats.reshape(b, cl, hw)
    if hw_pad != hw:
        x = jnp.pad(x, ((0, 0), (0, 0), (0, hw_pad - hw)))

    w_q, b_q, w_kv, b_kv = _fuse_params(params, c, cp)

    # Explicit scoped-VMEM budget (with headroom), capped to stay safe on v7x.
    est_bytes = 4 * (2 * cl * tq + 2 * cl * hw_pad          # x blocks (double-buffered)
                     + 2 * (3 * cp * cl + 3 * cp)           # fused weights / biases
                     + 2 * c * tq                           # output tile
                     + 2 * cp * hw_pad                      # kv
                     + 4 * tq * hw_pad                      # score / prob temporaries
                     + 4 * cp * tq)                         # q, feT
    vmem_limit = int(min(48 * 1024 * 1024, max(32 * 1024 * 1024, 2 * est_bytes)))

    kernel = functools.partial(sa_dotatt_kernel,
                               c=c, cp=cp, hw=hw, hw_pad=hw_pad, tq=tq)

    out = pl.pallas_call(
        kernel,
        out_shape=jax.ShapeDtypeStruct((b, c, hw_pad), jnp.float32),
        grid_spec=pltpu.PrefetchScalarGridSpec(
            num_scalar_prefetch=0,
            grid=(b, hw_pad // tq),                         # batch x query-slab
            in_specs=[
                pl.BlockSpec((1, cl, tq), lambda i, j: (i, 0, j)),       # x slab (q)
                pl.BlockSpec((1, cl, hw_pad), lambda i, j: (i, 0, 0)),   # x full (k,v)
                pl.BlockSpec((cp, cl), lambda i, j: (0, 0)),             # W_q (resident)
                pl.BlockSpec((cp, 1), lambda i, j: (0, 0)),              # b_q
                pl.BlockSpec((2 * cp, cl), lambda i, j: (0, 0)),         # W_kv
                pl.BlockSpec((2 * cp, 1), lambda i, j: (0, 0)),          # b_kv
            ],
            out_specs=pl.BlockSpec((1, c, tq), lambda i, j: (i, 0, j)),
        ),
        compiler_params=pltpu.CompilerParams(
            dimension_semantics=("parallel", "parallel"),
            vmem_limit_bytes=vmem_limit),
    )(x, x, w_q, b_q, w_kv, b_kv)

    if hw_pad != hw:
        out = out[:, :, :hw]          # only taken for ragged HW (not the demo path)
    return out.reshape(b, c, h, w)    # contiguous reshape: free metadata op


def reference(feats, params):
    b, c, l, h, w = feats.shape
    hw = h * w
    wp, bp, w1, b1, w2, b2, w3, b3 = params
    x = feats.reshape(b, c * l, hw)
    f2d = jnp.einsum('ok,bks->bos', wp, x) + bp[None, :, None]
    q = jnp.einsum('oc,bcs->bos', w1, f2d) + b1[None, :, None]
    k = jnp.einsum('oc,bcs->bos', w2, f2d) + b2[None, :, None]
    v = jnp.einsum('oc,bcs->bos', w3, f2d) + b3[None, :, None]
    s = jnp.einsum('bci,bcj->bij', q, k)
    attn = jax.nn.softmax(s, axis=-1)
    fe = jnp.einsum('bcj,bij->bci', v, attn)
    return fe.reshape(b, c, h, w)


if __name__ == "__main__":
    # Small deterministic config: feat_num=4 channels, band_num=8 bands, 16x16 spatial.
    B, C, L, H, W = 2, 4, 8, 16, 16

    key = jax.random.PRNGKey(0)
    ks = jax.random.split(key, 9)
    feats = jax.random.normal(ks[0], (B, C, L, H, W), dtype=jnp.float32)

    # Deterministic parameter init (synthetic; shapes match the torch module).
    wp = 0.1 * jax.random.normal(ks[1], (C, C * L), dtype=jnp.float32)  # Conv3d (L,1,1)
    bp = 0.1 * jax.random.normal(ks[2], (C,), dtype=jnp.float32)
    w1 = 0.1 * jax.random.normal(ks[3], (C, C), dtype=jnp.float32)      # 1x1 convs
    b1 = 0.1 * jax.random.normal(ks[4], (C,), dtype=jnp.float32)
    w2 = 0.1 * jax.random.normal(ks[5], (C, C), dtype=jnp.float32)
    b2 = 0.1 * jax.random.normal(ks[6], (C,), dtype=jnp.float32)
    w3 = 0.1 * jax.random.normal(ks[7], (C, C), dtype=jnp.float32)
    b3 = 0.1 * jax.random.normal(ks[8], (C,), dtype=jnp.float32)
    params = (wp, bp, w1, b1, w2, b2, w3, b3)

    out = jax.block_until_ready(sa_dotatt(feats, params))
    ref = jax.block_until_ready(reference(feats, params))

    assert out.shape == (B, C, H, W)
    assert jnp.allclose(out, ref, atol=1e-4, rtol=1e-4), "mismatch vs reference"

    print("KERNEL_OK")
</pallas_src>

<mosaic_0001>
module attributes {stable_mosaic.version = 11 : i64} {
  func.func @sa_dotatt_kernel(%arg0: i32, %arg1: i32, %arg2: memref<1x32x128xf32, #tpu.memory_space<vmem>>, %arg3: memref<1x32x256xf32, #tpu.memory_space<vmem>>, %arg4: memref<8x32xf32, #tpu.memory_space<vmem>>, %arg5: memref<8x1xf32, #tpu.memory_space<vmem>>, %arg6: memref<16x32xf32, #tpu.memory_space<vmem>>, %arg7: memref<16x1xf32, #tpu.memory_space<vmem>>, %arg8: memref<1x4x128xf32, #tpu.memory_space<vmem>>) attributes {dimension_semantics = [#tpu.dimension_semantics<parallel>, #tpu.dimension_semantics<parallel>], iteration_bounds = array<i64: 2, 2>, scalar_prefetch = 0 : i64, scratch_operands = 0 : i64, tpu.core_type = #tpu.core_type<tc>, window_params = [{transform_indices = @transform_0, window_bounds = array<i64: 1, 32, 128>}, {transform_indices = @transform_1, window_bounds = array<i64: 1, 32, 256>}, {pipeline_mode = #tpu.pipeline_mode<synchronous>, transform_indices = @transform_2, window_bounds = array<i64: 8, 32>}, {pipeline_mode = #tpu.pipeline_mode<synchronous>, transform_indices = @transform_3, window_bounds = array<i64: 8, 1>}, {pipeline_mode = #tpu.pipeline_mode<synchronous>, transform_indices = @transform_4, window_bounds = array<i64: 16, 32>}, {pipeline_mode = #tpu.pipeline_mode<synchronous>, transform_indices = @transform_5, window_bounds = array<i64: 16, 1>}, {transform_indices = @transform_6, window_bounds = array<i64: 1, 4, 128>}]} {
    %c0 = arith.constant 0 : index
    %c0_0 = arith.constant 0 : index
    %c0_1 = arith.constant 0 : index
    %0 = vector.load %arg2[%c0, %c0_0, %c0_1] : memref<1x32x128xf32, #tpu.memory_space<vmem>>, vector<1x32x128xf32>
    %1 = vector.shape_cast %0 : vector<1x32x128xf32> to vector<32x128xf32>
    %c0_2 = arith.constant 0 : index
    %c0_3 = arith.constant 0 : index
    %c0_4 = arith.constant 0 : index
    %2 = vector.load %arg3[%c0_2, %c0_3, %c0_4] : memref<1x32x256xf32, #tpu.memory_space<vmem>>, vector<1x32x256xf32>
    %3 = vector.shape_cast %2 : vector<1x32x256xf32> to vector<32x256xf32>
    %c0_5 = arith.constant 0 : index
    %c0_6 = arith.constant 0 : index
    %4 = vector.load %arg4[%c0_5, %c0_6] : memref<8x32xf32, #tpu.memory_space<vmem>>, vector<8x32xf32>
    %cst = arith.constant dense<0.000000e+00> : vector<8x128xf32>
    %5 = tpu.matmul %4, %1, %cst {dimension_numbers = #tpu.dot_dimension_numbers<[1], [0], [0], [1], [0, 0, 1, 1], [], []>} : vector<8x32xf32>, vector<32x128xf32>, vector<8x128xf32> -> vector<8x128xf32>
    %c0_7 = arith.constant 0 : index
    %c0_8 = arith.constant 0 : index
    %6 = vector.load %arg5[%c0_7, %c0_8] : memref<8x1xf32, #tpu.memory_space<vmem>>, vector<8x1xf32>
    %7 = vector.broadcast %6 : vector<8x1xf32> to vector<8x128xf32>
    %8 = arith.addf %5, %7 : vector<8x128xf32>
    %c0_9 = arith.constant 0 : index
    %c0_10 = arith.constant 0 : index
    %9 = vector.load %arg6[%c0_9, %c0_10] : memref<16x32xf32, #tpu.memory_space<vmem>>, vector<16x32xf32>
    %cst_11 = arith.constant dense<0.000000e+00> : vector<16x256xf32>
    %10 = tpu.matmul %9, %3, %cst_11 {dimension_numbers = #tpu.dot_dimension_numbers<[1], [0], [0], [1], [0, 0, 1, 1], [], []>} : vector<16x32xf32>, vector<32x256xf32>, vector<16x256xf32> -> vector<16x256xf32>
    %c0_12 = arith.constant 0 : index
    %c0_13 = arith.constant 0 : index
    %11 = vector.load %arg7[%c0_12, %c0_13] : memref<16x1xf32, #tpu.memory_space<vmem>>, vector<16x1xf32>
    %12 = vector.broadcast %11 : vector<16x1xf32> to vector<16x256xf32>
    %13 = arith.addf %10, %12 : vector<16x256xf32>
    %14 = vector.extract_strided_slice %13 {offsets = [0, 0], sizes = [8, 256], strides = [1, 1]} : vector<16x256xf32> to vector<8x256xf32>
    %15 = vector.extract_strided_slice %13 {offsets = [8, 0], sizes = [8, 256], strides = [1, 1]} : vector<16x256xf32> to vector<8x256xf32>
    %cst_14 = arith.constant dense<0.000000e+00> : vector<128x256xf32>
    %16 = tpu.matmul %8, %14, %cst_14 {dimension_numbers = #tpu.dot_dimension_numbers<[0], [0], [1], [1], [0, 1, 1, 1], [], []>} : vector<8x128xf32>, vector<8x256xf32>, vector<128x256xf32> -> vector<128x256xf32>
    %cst_15 = arith.constant dense<0xFF800000> : vector<128xf32>
    %17 = vector.multi_reduction <maximumf>, %16, %cst_15 [1] : vector<128x256xf32> to vector<128xf32>
    %18 = vector.shape_cast %17 : vector<128xf32> to vector<128x1xf32>
    %19 = vector.broadcast %18 : vector<128x1xf32> to vector<128x256xf32>
    %20 = arith.subf %16, %19 : vector<128x256xf32>
    %21 = math.exp %20 : vector<128x256xf32>
    %cst_16 = arith.constant dense<0.000000e+00> : vector<128xf32>
    %22 = vector.multi_reduction <add>, %21, %cst_16 [1] : vector<128x256xf32> to vector<128xf32>
    %23 = vector.shape_cast %22 : vector<128xf32> to vector<128x1xf32>
    %cst_17 = arith.constant dense<0.000000e+00> : vector<128x8xf32>
    %24 = tpu.matmul %21, %15, %cst_17 {dimension_numbers = #tpu.dot_dimension_numbers<[1], [1], [0], [0], [0, 0, 1, 0], [], []>} : vector<128x256xf32>, vector<8x256xf32>, vector<128x8xf32> -> vector<128x8xf32>
    %cst_18 = arith.constant 1.000000e+00 : f32
    %25 = vector.broadcast %cst_18 : f32 to vector<128x1xf32>
    %26 = arith.divf %25, %23 : vector<128x1xf32>
    %27 = vector.broadcast %26 : vector<128x1xf32> to vector<128x8xf32>
    %28 = arith.mulf %24, %27 : vector<128x8xf32>
    %29 = tpu.transpose %28, [1, 0] : vector<128x8xf32> -> vector<8x128xf32>
    %30 = vector.extract_strided_slice %29 {offsets = [0, 0], sizes = [4, 128], strides = [1, 1]} : vector<8x128xf32> to vector<4x128xf32>
    %c0_19 = arith.constant 0 : index
    %c0_20 = arith.constant 0 : index
    %c0_21 = arith.constant 0 : index
    %31 = vector.load %arg8[%c0_19, %c0_20, %c0_21] : memref<1x4x128xf32, #tpu.memory_space<vmem>>, vector<1x4x128xf32>
    %32 = vector.shape_cast %31 : vector<1x4x128xf32> to vector<4x128xf32>
    %33 = vector.shape_cast %30 : vector<4x128xf32> to vector<1x4x128xf32>
    tpu.vector_store %arg8[%c0_19, %c0_20, %c0_21], %33 {strides = array<i32>} : memref<1x4x128xf32, #tpu.memory_space<vmem>>, vector<1x4x128xf32>,
    return
  }
  func.func @transform_0(%arg0: i32, %arg1: i32) -> (i32, i32, i32) {
    %c0_i32 = arith.constant 0 : i32
    %c0_i32_0 = arith.constant 0 : i32
    return %arg0, %c0_i32, %arg1 : i32, i32, i32
  }
  func.func @transform_1(%arg0: i32, %arg1: i32) -> (i32, i32, i32) {
    %c0_i32 = arith.constant 0 : i32
    %c0_i32_0 = arith.constant 0 : i32
    %c0_i32_1 = arith.constant 0 : i32
    return %arg0, %c0_i32, %c0_i32_0 : i32, i32, i32
  }
  func.func @transform_2(%arg0: i32, %arg1: i32) -> (i32, i32) {
    %c0_i32 = arith.constant 0 : i32
    %c0_i32_0 = arith.constant 0 : i32
    %c0_i32_1 = arith.constant 0 : i32
    return %c0_i32, %c0_i32_0 : i32, i32
  }
  func.func @transform_3(%arg0: i32, %arg1: i32) -> (i32, i32) {
    %c0_i32 = arith.constant 0 : i32
    %c0_i32_0 = arith.constant 0 : i32
    %c0_i32_1 = arith.constant 0 : i32
    return %c0_i32, %c0_i32_0 : i32, i32
  }
  func.func @transform_4(%arg0: i32, %arg1: i32) -> (i32, i32) {
    %c0_i32 = arith.constant 0 : i32
    %c0_i32_0 = arith.constant 0 : i32
    %c0_i32_1 = arith.constant 0 : i32
    return %c0_i32, %c0_i32_0 : i32, i32
  }
  func.func @transform_5(%arg0: i32, %arg1: i32) -> (i32, i32) {
    %c0_i32 = arith.constant 0 : i32
    %c0_i32_0 = arith.constant 0 : i32
    %c0_i32_1 = arith.constant 0 : i32
    return %c0_i32, %c0_i32_0 : i32, i32
  }
  func.func @transform_6(%arg0: i32, %arg1: i32) -> (i32, i32, i32) {
    %c0_i32 = arith.constant 0 : i32
    %c0_i32_0 = arith.constant 0 : i32
    return %arg0, %c0_i32, %arg1 : i32, i32, i32
  }
}

</mosaic_0001>

<llo_original>
// kernel: tpu_custom_call.1
$region0: #{tpu_custom_call.1}
  #allocation0 [shape = 'u32[]', space=smem, size = 0x4, offset = 0x4, fixed_abs, tag = 'smem constant byte address 0x4 - core index']
  #allocation1 [shape = 'u32[144,128]{1,0:T(1,128)}', space=vmem, size = 0x12000, scoped, tag = 'internal scratch']
  %s0 = inlined_call_operand.hbm [shape: f32[2,32,256], index: 0, kind: input, shape index: {}]
  %s1 = inlined_call_operand.hbm [shape: f32[2,32,256], index: 1, kind: input, shape index: {}]
  %s2 = inlined_call_operand.vmem [shape: f32[8,32], index: 2, kind: input, shape index: {}]
  %s3 = inlined_call_operand.vmem [shape: f32[8,1], index: 3, kind: input, shape index: {}]
  %s4 = inlined_call_operand.vmem [shape: f32[16,32], index: 4, kind: input, shape index: {}]
  %s5 = inlined_call_operand.vmem [shape: f32[16,1], index: 5, kind: input, shape index: {}]
  %s6 = inlined_call_operand.hbm [shape: f32[2,4,256], index: 6, kind: output, shape index: {}]
  %s7 = sld [smem:[#allocation0]]
  $region65: #{tpu_custom_call.1} parent=0
    _
  %s9 = ssub.s32 1, %s7
  %s10 = scalar_select 0, %s9, %s7
  $region1: #{tpu_custom_call.1} parent=0
    #allocation2 [shape = 'u8[32768]{0}', space=vmem, size = 0x8000, scoped, tag = 'input window, operand 0']
    #allocation3 [shape = 's32[2]{0}', space=sflag, size = 0x8, scoped, tag = 'scoped memory for tpu_custom_call.1']
    #allocation4 [shape = 's32[2]{0}', space=sflag, size = 0x8, scoped, tag = 'scoped memory for tpu_custom_call.1']
    #allocation5 [shape = 'u8[65536]{0}', space=vmem, size = 0x10000, scoped, tag = 'input window, operand 1']
    #allocation6 [shape = 's32[2]{0}', space=sflag, size = 0x8, scoped, tag = 'scoped memory for tpu_custom_call.1']
    #allocation7 [shape = 'u8[4096]{0}', space=vmem, size = 0x1000, scoped, tag = 'output window, operand 0']
    %11 = vsyncpa [#allocation3], 0
    %s12 = scalar_lea.sflag [#allocation3], 1
    %13 = vsyncpa %s12, 0
    %14 = vsyncpa [#allocation6], 0
    %s15 = scalar_lea.sflag [#allocation6], 1
    %16 = vsyncpa %s15, 0
    %17 = vsyncpa [#allocation4], 0
    %s18 = scalar_lea.sflag [#allocation4], 1
    %19 = vsyncpa %s18, 0
    loop: start=0, step=1, limit=6
    $region2: #{tpu_custom_call.1} parent=1 // loop_pre_header
      _
    $region3: #{tpu_custom_call.1} parent=1 // loop_header
      %s21 = sphi 0, %s25
      %p22 = scmp.ge.s32.totalorder %s21, 6
      %s28 = sphi 0, %s40
      %s29 = sphi 0, %s36
      %s30 = sphi 0, %s28
      %s31 = sphi 0, %s29
      %s32 = sphi 0, %s30
      %s33 = sphi 0, %s31
      %s45 = sphi 0, %s47
      %s48 = sphi 0, %s45
      %s49 = sphi 0, %s48
      %s65 = sphi 0, %s49
      %s71 = sphi 0, %s73
      %s74 = sphi 0, %s71
      %s75 = sphi 0, %s74
      %s91 = sphi 0, %s75
      %s95 = sphi 0, %s95
      %s97 = sphi 0, %s95
      %s98 = sphi 0, %s97
      %s112 = sphi 0, %s98
      %s116 = sphi 0, %s116
      %s118 = sphi 0, %s116
      %s119 = sphi 0, %s118
      %s133 = sphi 0, %s119
      %s137 = sphi 0, %s137
      %s139 = sphi 0, %s137
      %s140 = sphi 0, %s139
      %s154 = sphi 0, %s140
      %s158 = sphi 0, %s158
      %s160 = sphi 0, %s158
      %s161 = sphi 0, %s160
      %s175 = sphi 0, %s161
      %s183 = sphi 0, %s185
      %s186 = sphi 0, %s183
      %s187 = sphi 0, %s186
      %s203 = sphi 0, %s187
    $region4: #{tpu_custom_call.1} parent=1 // loop_header_branch
      %24 = sbr.rel (%p22) target = $region8
    $region5: #{tpu_custom_call.1} parent=1 // loop_body
      %s26 = ssub.s32 %s21, 1
      %s27 = ssub.s32 %s21, 2
      %s34 = sadd.s32 1, %s29
      %p35 = scmp.ge.s32.totalorder %s34, 2
      %s36 = scalar_select %p35, 0, %s34
      %s37 = sadd.s32 1, %s28
      %s38 = scalar_select %p35, %s37, %s28
      %p39 = scmp.ge.s32.totalorder %s38, 2
      %s40 = scalar_select %p39, 0, %s38
      %s41 = ssub.s32 %s28, %s40
      %s42 = ssub.s32 %s29, %s36
      %s43 = sor.u32 %s41, %s42
      %p44 = scmp.eq.s32.totalorder %s43, 0
      %s46 = sadd.s32 %s45, 1
      %s47 = scalar_select %p44, %s45, %s46
      %p50 = pneg %p44
      %p51 = scmp.eq.s32.totalorder %s21, 3
      %p52 = por %p50, %p51
      %p53 = scmp.ne.s32.totalorder %s45, %s48
      %p54 = scmp.eq.s32.totalorder %s21, 0
      %p55 = por %p53, %p54
      %p56 = scmp.ne.s32.totalorder %s45, %s48
      %p57 = scmp.eq.s32.totalorder %s26, 3
      %p58 = por %p56, %p57
      %p59 = scmp.ne.s32.totalorder %s48, %s49
      %p60 = scmp.eq.s32.totalorder %s26, 0
      %p61 = por %p59, %p60
      %p62 = scmp.ne.s32.totalorder %s48, %s49
      %p63 = scmp.eq.s32.totalorder %s27, 3
      %p64 = por %p62, %p63
      %p66 = scmp.ne.s32.totalorder %s49, %s65
      %p67 = scmp.eq.s32.totalorder %s27, 0
      %p68 = por %p66, %p67
      %s69 = ssub.s32 %s28, %s40
      %p70 = scmp.eq.s32.totalorder %s69, 0
      %s72 = sadd.s32 %s71, 1
      %s73 = scalar_select %p70, %s71, %s72
      %p76 = pneg %p70
      %p77 = scmp.eq.s32.totalorder %s21, 3
      %p78 = por %p76, %p77
      %p79 = scmp.ne.s32.totalorder %s71, %s74
      %p80 = scmp.eq.s32.totalorder %s21, 0
      %p81 = por %p79, %p80
      %p82 = scmp.ne.s32.totalorder %s71, %s74
      %p83 = scmp.eq.s32.totalorder %s26, 3
      %p84 = por %p82, %p83
      %p85 = scmp.ne.s32.totalorder %s74, %s75
      %p86 = scmp.eq.s32.totalorder %s26, 0
      %p87 = por %p85, %p86
      %p88 = scmp.ne.s32.totalorder %s74, %s75
      %p89 = scmp.eq.s32.totalorder %s27, 3
      %p90 = por %p88, %p89
      %p92 = scmp.ne.s32.totalorder %s75, %s91
      %p93 = scmp.eq.s32.totalorder %s27, 0
      %p94 = por %p92, %p93
      %s96 = sadd.s32 %s95, 1
      %p99 = scmp.eq.s32.totalorder %s21, 3
      %p100 = scmp.ne.s32.totalorder %s95, %s97
      %p101 = scmp.eq.s32.totalorder %s21, 0
      %p102 = por %p100, %p101
      %p103 = scmp.ne.s32.totalorder %s95, %s97
      %p104 = scmp.eq.s32.totalorder %s26, 3
      %p105 = por %p103, %p104
      %p106 = scmp.ne.s32.totalorder %s97, %s98
      %p107 = scmp.eq.s32.totalorder %s26, 0
      %p108 = por %p106, %p107
      %p109 = scmp.ne.s32.totalorder %s97, %s98
      %p110 = scmp.eq.s32.totalorder %s27, 3
      %p111 = por %p109, %p110
      %p113 = scmp.ne.s32.totalorder %s98, %s112
      %p114 = scmp.eq.s32.totalorder %s27, 0
      %p115 = por %p113, %p114
      %s117 = sadd.s32 %s116, 1
      %p120 = scmp.eq.s32.totalorder %s21, 3
      %p121 = scmp.ne.s32.totalorder %s116, %s118
      %p122 = scmp.eq.s32.totalorder %s21, 0
      %p123 = por %p121, %p122
      %p124 = scmp.ne.s32.totalorder %s116, %s118
      %p125 = scmp.eq.s32.totalorder %s26, 3
      %p126 = por %p124, %p125
      %p127 = scmp.ne.s32.totalorder %s118, %s119
      %p128 = scmp.eq.s32.totalorder %s26, 0
      %p129 = por %p127, %p128
      %p130 = scmp.ne.s32.totalorder %s118, %s119
      %p131 = scmp.eq.s32.totalorder %s27, 3
      %p132 = por %p130, %p131
      %p134 = scmp.ne.s32.totalorder %s119, %s133
      %p135 = scmp.eq.s32.totalorder %s27, 0
      %p136 = por %p134, %p135
      %s138 = sadd.s32 %s137, 1
      %p141 = scmp.eq.s32.totalorder %s21, 3
      %p142 = scmp.ne.s32.totalorder %s137, %s139
      %p143 = scmp.eq.s32.totalorder %s21, 0
      %p144 = por %p142, %p143
      %p145 = scmp.ne.s32.totalorder %s137, %s139
      %p146 = scmp.eq.s32.totalorder %s26, 3
      %p147 = por %p145, %p146
      %p148 = scmp.ne.s32.totalorder %s139, %s140
      %p149 = scmp.eq.s32.totalorder %s26, 0
      %p150 = por %p148, %p149
      %p151 = scmp.ne.s32.totalorder %s139, %s140
      %p152 = scmp.eq.s32.totalorder %s27, 3
      %p153 = por %p151, %p152
      %p155 = scmp.ne.s32.totalorder %s140, %s154
      %p156 = scmp.eq.s32.totalorder %s27, 0
      %p157 = por %p155, %p156
      %s159 = sadd.s32 %s158, 1
      %p162 = scmp.eq.s32.totalorder %s21, 3
      %p163 = scmp.ne.s32.totalorder %s158, %s160
      %p164 = scmp.eq.s32.totalorder %s21, 0
      %p165 = por %p163, %p164
      %p166 = scmp.ne.s32.totalorder %s158, %s160
      %p167 = scmp.eq.s32.totalorder %s26, 3
      %p168 = por %p166, %p167
      %p169 = scmp.ne.s32.totalorder %s160, %s161
      %p170 = scmp.eq.s32.totalorder %s26, 0
      %p171 = por %p169, %p170
      %p172 = scmp.ne.s32.totalorder %s160, %s161
      %p173 = scmp.eq.s32.totalorder %s27, 3
      %p174 = por %p172, %p173
      %p176 = scmp.ne.s32.totalorder %s161, %s175
      %p177 = scmp.eq.s32.totalorder %s27, 0
      %p178 = por %p176, %p177
      %s179 = ssub.s32 %s28, %s40
      %s180 = ssub.s32 %s29, %s36
      %s181 = sor.u32 %s179, %s180
      %p182 = scmp.eq.s32.totalorder %s181, 0
      %s184 = sadd.s32 %s183, 1
      %s185 = scalar_select %p182, %s183, %s184
      %p188 = pneg %p182
      %p189 = scmp.eq.s32.totalorder %s21, 3
      %p190 = por %p188, %p189
      %p191 = scmp.ne.s32.totalorder %s183, %s186
      %p192 = scmp.eq.s32.totalorder %s21, 0
      %p193 = por %p191, %p192
      %p194 = scmp.ne.s32.totalorder %s183, %s186
      %p195 = scmp.eq.s32.totalorder %s26, 3
      %p196 = por %p194, %p195
      %p197 = scmp.ne.s32.totalorder %s186, %s187
      %p198 = scmp.eq.s32.totalorder %s26, 0
      %p199 = por %p197, %p198
      %p200 = scmp.ne.s32.totalorder %s186, %s187
      %p201 = scmp.eq.s32.totalorder %s27, 3
      %p202 = por %p200, %p201
      %p204 = scmp.ne.s32.totalorder %s187, %s203
      %p205 = scmp.eq.s32.totalorder %s27, 0
      %p206 = por %p204, %p205
      %p207 = scmp.le.s32.totalorder 1, %s21
      %p208 = scmp.lt.s32.totalorder %s21, 5
      %p209 = pnand %p207, %p208
      %p210 = pneg %p209
      // Predicated region
      $region9: #{tpu_custom_call.1} parent=5 // pred_check
        _
      $region10: #{tpu_custom_call.1} parent=5 // pred_check_branch
        %212 = sbr.rel (%p209) target = $region12
      $region11: #{tpu_custom_call.1} parent=5 // pred_region
        %s213 = ssub.s32 %s21, 1
        // Predicated region
        $region13: #{tpu_custom_call.1} parent=11 // pred_check
          %p214 = pneg %p108
        $region14: #{tpu_custom_call.1} parent=11 // pred_check_branch
          %216 = sbr.rel (%p214) target = $region16
        $region15: #{tpu_custom_call.1} parent=11 // pred_region
          _
        $region16: #{tpu_custom_call.1} parent=11 // pred_fallthru
          _
        // Predicated region
        $region17: #{tpu_custom_call.1} parent=11 // pred_check
          %p217 = pneg %p129
        $region18: #{tpu_custom_call.1} parent=11 // pred_check_branch
          %219 = sbr.rel (%p217) target = $region20
        $region19: #{tpu_custom_call.1} parent=11 // pred_region
          _
        $region20: #{tpu_custom_call.1} parent=11 // pred_fallthru
          _
        // Predicated region
        $region21: #{tpu_custom_call.1} parent=11 // pred_check
          %p220 = pneg %p150
        $region22: #{tpu_custom_call.1} parent=11 // pred_check_branch
          %222 = sbr.rel (%p220) target = $region24
        $region23: #{tpu_custom_call.1} parent=11 // pred_region
          _
        $region24: #{tpu_custom_call.1} parent=11 // pred_fallthru
          _
        // Predicated region
        $region25: #{tpu_custom_call.1} parent=11 // pred_check
          %p223 = pneg %p171
        $region26: #{tpu_custom_call.1} parent=11 // pred_check_branch
          %225 = sbr.rel (%p223) target = $region28
        $region27: #{tpu_custom_call.1} parent=11 // pred_region
          _
        $region28: #{tpu_custom_call.1} parent=11 // pred_fallthru
          _
      $region12: #{tpu_custom_call.1} parent=5 // pred_fallthru
        _
      %p226 = scmp.lt.s32.totalorder %s21, 4
      // Predicated region
      $region29: #{tpu_custom_call.1} parent=5 // pred_check
        %p227 = pneg %p226
      $region30: #{tpu_custom_call.1} parent=5 // pred_check_branch
        %229 = sbr.rel (%p227) target = $region32
      $region31: #{tpu_custom_call.1} parent=5 // pred_region
        // Predicated region
        $region33: #{tpu_custom_call.1} parent=31 // pred_check
          %p230 = pneg %p55
        $region34: #{tpu_custom_call.1} parent=31 // pred_check_branch
          %232 = sbr.rel (%p230) target = $region36
        $region35: #{tpu_custom_call.1} parent=31 // pred_region
          %s233 = sand.u32 %s45, 1
          %s234 = scalar_lea.sflag [#allocation3], %s233
          %s235 = sand.u32 %s45, 1
          %s236 = smul.addr %s235, 32
          %s237 = scalar_lea.vmem [#allocation2], %s236
          %s239 = ssub.s32 512, 512
          %240 = vsyncadd %s234, %s239
          %s241 = smul.addr %s28, 8
          %s242 = sadd.s32 %s29, %s241
          %s243 = smul.addr %s242, 128
          %s244 = scalar_lea.hbm %s0, %s243
          %s245 = sshll.u32 %s237, 4
          %s246 = int_to_ptr.vmem [resolvable:$true] %s245
          %251 = dma.hbm_to_vmem [thread:$0]  %s244, 512, %s246, %s234, 256, 128, 8
        $region36: #{tpu_custom_call.1} parent=31 // pred_fallthru
          _
        // Predicated region
        $region37: #{tpu_custom_call.1} parent=31 // pred_check
          %p252 = pneg %p81
        $region38: #{tpu_custom_call.1} parent=31 // pred_check_branch
          %254 = sbr.rel (%p252) target = $region40
        $region39: #{tpu_custom_call.1} parent=31 // pred_region
          %s255 = sand.u32 %s71, 1
          %s256 = scalar_lea.sflag [#allocation6], %s255
          %s257 = sand.u32 %s71, 1
          %s258 = smul.addr %s257, 64
          %s259 = scalar_lea.vmem [#allocation5], %s258
          %s261 = ssub.s32 1024, 1024
          %262 = vsyncadd %s256, %s261
          %s263 = smul.addr %s28, 8
          %s264 = smul.addr %s263, 128
          %s265 = scalar_lea.hbm %s1, %s264
          %s266 = sshll.u32 %s259, 4
          %s267 = int_to_ptr.vmem [resolvable:$true] %s266
          %272 = dma.hbm_to_vmem [thread:$0]  %s265, 1024, %s267, %s256, 256, 256, 16
        $region40: #{tpu_custom_call.1} parent=31 // pred_fallthru
          _
      $region32: #{tpu_custom_call.1} parent=5 // pred_fallthru
        _
      %p273 = scmp.le.s32.totalorder 1, %s21
      %p274 = scmp.lt.s32.totalorder %s21, 5
      %p275 = pnand %p273, %p274
      %p276 = pneg %p275
      // Predicated region
      $region41: #{tpu_custom_call.1} parent=5 // pred_check
        _
      $region42: #{tpu_custom_call.1} parent=5 // pred_check_branch
        %278 = sbr.rel (%p275) target = $region44
      $region43: #{tpu_custom_call.1} parent=5 // pred_region
        %s279 = ssub.s32 %s21, 1
        %s280 = sand.u32 %s48, 1
        %s281 = scalar_lea.sflag [#allocation3], %s280
        %s282 = sand.u32 %s48, 1
        %s283 = smul.addr %s282, 32
        %s284 = scalar_lea.vmem [#allocation2], %s283
        // Predicated region
        $region45: #{tpu_custom_call.1} parent=43 // pred_check
          %p285 = pneg %p61
        $region46: #{tpu_custom_call.1} parent=43 // pred_check_branch
          %287 = sbr.rel (%p285) target = $region48
        $region47: #{tpu_custom_call.1} parent=43 // pred_region
          %288 = dma.done %s281, 512
        $region48: #{tpu_custom_call.1} parent=43 // pred_fallthru
          _
        %s289 = sand.u32 %s74, 1
        %s290 = scalar_lea.sflag [#allocation6], %s289
        %s291 = sand.u32 %s74, 1
        %s292 = smul.addr %s291, 64
        %s293 = scalar_lea.vmem [#allocation5], %s292
        // Predicated region
        $region49: #{tpu_custom_call.1} parent=43 // pred_check
          %p294 = pneg %p87
        $region50: #{tpu_custom_call.1} parent=43 // pred_check_branch
          %296 = sbr.rel (%p294) target = $region52
        $region51: #{tpu_custom_call.1} parent=43 // pred_region
          %297 = dma.done %s290, 1024
        $region52: #{tpu_custom_call.1} parent=43 // pred_fallthru
          _
        %s298 = sand.u32 %s48, 1
        %s299 = scalar_lea.sflag [#allocation3], %s298
        %s300 = sand.u32 %s48, 1
        %s301 = smul.addr %s300, 32
        %s302 = scalar_lea.vmem [#allocation2], %s301
        %p303 = pneg %p61
        %p304 = pneg %p58
        %s305 = sand.u32 %s74, 1
        %s306 = scalar_lea.sflag [#allocation6], %s305
        %s307 = sand.u32 %s74, 1
        %s308 = smul.addr %s307, 64
        %s309 = scalar_lea.vmem [#allocation5], %s308
        %p310 = pneg %p87
        %p311 = pneg %p84
        %p312 = pneg %p108
        %p313 = pneg %p105
        %p314 = pneg %p129
        %p315 = pneg %p126
        %p316 = pneg %p150
        %p317 = pneg %p147
        %p318 = pneg %p171
        %p319 = pneg %p168
        %p320 = pneg %p199
        %p321 = pneg %p196
        %s322 = sand.u32 %s186, 1
        %s323 = scalar_lea.sflag [#allocation4], %s322
        %s324 = sand.u32 %s186, 1
        %s325 = smul.addr %s324, 4
        %s326 = scalar_lea.vmem [#allocation7], %s325
        %v327 = vld [vmem:[%s284] sm:$0xff]
        %v328 = vld [vmem:[%s284 + $0x8] sm:$0xff]
        %v329 = vld [vmem:[%s284 + $0x10] sm:$0xff]
        %v330 = vld [vmem:[%s284 + $0x18] sm:$0xff]
        %v331 = vld [vmem:[%s293] sm:$0xff]
        %v332 = vld [vmem:[%s293 + $0x8] sm:$0xff]
        %v333 = vld [vmem:[%s293 + $0x10] sm:$0xff]
        %v334 = vld [vmem:[%s293 + $0x18] sm:$0xff]
        %v335 = vld [vmem:[%s293 + $0x20] sm:$0xff]
        %v336 = vld [vmem:[%s293 + $0x28] sm:$0xff]
        %v337 = vld [vmem:[%s293 + $0x30] sm:$0xff]
        %v338 = vld [vmem:[%s293 + $0x38] sm:$0xff]
        %v339 = vld [vmem:[%s2] sm:$0xff]
        %v340 = vld [vmem:[%s3] sm:$0xff]
        %342 = vset.pattern.permute.xlu0 0
        %343 = vperm.xlu0 %342, %v340
        %v344 = vpop.permute.xlu0 %343
        %vm346 = vcmask 261120
        %v348 = vsel %vm346, %v339, 0
        %350 = vmatprep.subr.mxu0 0.0
        %351 = vmatpush1.msra.mxu0 %v327
        %352 = vmatprep.subr.mxu0 0.0
        %353 = vmatpush1.msra.mxu0 %v328
        %354 = vmatprep.subr.mxu0 0.0
        %355 = vmatpush1.msra.mxu0 %v329
        %356 = vmatprep.subr.mxu0 0.0
        %357 = vmatpush1.msra.mxu0 %v330
        %358 = vmatprep.subr.mxu0 0.0
        %359 = vmatpush1.msra.mxu0 0.0
        %360 = vmatprep.subr.mxu0 0.0
        %361 = vmatpush1.msra.mxu0 0.0
        %362 = vmatprep.subr.mxu0 0.0
        %363 = vmatpush1.msra.mxu0 0.0
        %364 = vmatprep.subr.mxu0 0.0
        %365 = vmatpush1.msra.mxu0 0.0
        %366 = vmatprep.subr.mxu0 0.0
        %367 = vmatpush1.msra.mxu0 0.0
        %368 = vmatprep.subr.mxu0 0.0
        %369 = vmatpush1.msra.mxu0 0.0
        %370 = vmatprep.subr.mxu0 0.0
        %371 = vmatpush1.msra.mxu0 0.0
        %372 = vmatprep.subr.mxu0 0.0
        %373 = vmatpush1.msra.mxu0 0.0
        %374 = vmatprep.subr.mxu0 0.0
        %375 = vmatpush1.msra.mxu0 0.0
        %376 = vmatprep.subr.mxu0 0.0
        %377 = vmatpush1.msra.mxu0 0.0
        %378 = vmatprep.subr.mxu0 0.0
        %379 = vmatpush1.msra.mxu0 0.0
        %380 = vmatprep.subr.mxu0 0.0
        %381 = vmatpush1.msra.mxu0 0.0
        %382 = vmatprep.subr.mxu0 0.0
        %383 = vmatpush1.msra.mxu0 0.0
        %384 = vmatprep.subr.mxu0 0.0
        %385 = vmatpush1.msra.mxu0 0.0
        %386 = vmatprep.subr.mxu0 0.0
        %387 = vmatpush1.msra.mxu0 0.0
        %388 = vmatprep.subr.mxu0 0.0
        %389 = vmatpush1.msra.mxu0 0.0
        %390 = vmatprep.subr.mxu0 0.0
        %391 = vmatpush1.msra.mxu0 0.0
        %392 = vmatprep.subr.mxu0 0.0
        %393 = vmatpush1.msra.mxu0 0.0
        %394 = vmatprep.subr.mxu0 0.0
        %395 = vmatpush1.msra.mxu0 0.0
        %396 = vmatprep.subr.mxu0 0.0
        %397 = vmatpush1.msra.mxu0 0.0
        %398 = vmatprep.subr.mxu0 0.0
        %399 = vmatpush1.msra.mxu0 0.0
        %400 = vmatprep.subr.mxu0 0.0
        %401 = vmatpush1.msra.mxu0 0.0
        %402 = vmatprep.subr.mxu0 0.0
        %403 = vmatpush1.msra.mxu0 0.0
        %404 = vmatprep.subr.mxu0 0.0
        %405 = vmatpush1.msra.mxu0 0.0
        %406 = vmatprep.subr.mxu0 0.0
        %407 = vmatpush1.msra.mxu0 0.0
        %408 = vmatprep.subr.mxu0 0.0
        %409 = vmatpush1.msra.mxu0 0.0
        %410 = vmatprep.subr.mxu0 0.0
        %411 = vmatpush1.msra.mxu0 0.0
        %412 = vmatprep.subr.mxu0 0.0
        %413 = vmatpush1.msra.mxu0 0.0
        %414 = vmatprep.mubr.f32.mxu0 0.0
        %415 = vmatmul.mubr.f32.gmra.mrb[0].mxu0 %v348
        %v416 = vpop.f32.mrb[0].mxu0
        %v417 = vadd.f32 %v344, %v416
        %v418 = vpop.f32.mrb[0].mxu0
        %419 = vdwg.mxu0
        %v420 = vld [vmem:[%s4] sm:$0xff]
        %v421 = vld [vmem:[%s4 + $0x8] sm:$0xff]
        %v422 = vld [vmem:[%s5] sm:$0xff]
        %v423 = vld [vmem:[%s5 + $0x8] sm:$0xff]
        %425 = vset.pattern.permute.xlu0 0
        %426 = vperm.xlu0 %425, %v422
        %v427 = vpop.permute.xlu0 %426
        %430 = vset.pattern.permute.xlu0 0
        %431 = vperm.xlu0 %430, %v423
        %v432 = vpop.permute.xlu0 %431
        %v435 = vsel %vm346, %v420, 0
        %v438 = vsel %vm346, %v421, 0
        %440 = vmatprep.subr.mxu0 %v332
        %441 = vmatpush1.msra.mxu0 %v331
        %442 = vmatprep.subr.mxu0 %v334
        %443 = vmatpush1.msra.mxu0 %v333
        %444 = vmatprep.subr.mxu0 %v336
        %445 = vmatpush1.msra.mxu0 %v335
        %446 = vmatprep.subr.mxu0 %v338
        %447 = vmatpush1.msra.mxu0 %v337
        %448 = vmatprep.subr.mxu0 0.0
        %449 = vmatpush1.msra.mxu0 0.0
        %450 = vmatprep.subr.mxu0 0.0
        %451 = vmatpush1.msra.mxu0 0.0
        %452 = vmatprep.subr.mxu0 0.0
        %453 = vmatpush1.msra.mxu0 0.0
        %454 = vmatprep.subr.mxu0 0.0
        %455 = vmatpush1.msra.mxu0 0.0
        %456 = vmatprep.subr.mxu0 0.0
        %457 = vmatpush1.msra.mxu0 0.0
        %458 = vmatprep.subr.mxu0 0.0
        %459 = vmatpush1.msra.mxu0 0.0
        %460 = vmatprep.subr.mxu0 0.0
        %461 = vmatpush1.msra.mxu0 0.0
        %462 = vmatprep.subr.mxu0 0.0
        %463 = vmatpush1.msra.mxu0 0.0
        %464 = vmatprep.subr.mxu0 0.0
        %465 = vmatpush1.msra.mxu0 0.0
        %466 = vmatprep.subr.mxu0 0.0
        %467 = vmatpush1.msra.mxu0 0.0
        %468 = vmatprep.subr.mxu0 0.0
        %469 = vmatpush1.msra.mxu0 0.0
        %470 = vmatprep.subr.mxu0 0.0
        %471 = vmatpush1.msra.mxu0 0.0
        %472 = vmatprep.subr.mxu0 0.0
        %473 = vmatpush1.msra.mxu0 0.0
        %474 = vmatprep.subr.mxu0 0.0
        %475 = vmatpush1.msra.mxu0 0.0
        %476 = vmatprep.subr.mxu0 0.0
        %477 = vmatpush1.msra.mxu0 0.0
        %478 = vmatprep.subr.mxu0 0.0
        %479 = vmatpush1.msra.mxu0 0.0
        %480 = vmatprep.subr.mxu0 0.0
        %481 = vmatpush1.msra.mxu0 0.0
        %482 = vmatprep.subr.mxu0 0.0
        %483 = vmatpush1.msra.mxu0 0.0
        %484 = vmatprep.subr.mxu0 0.0
        %485 = vmatpush1.msra.mxu0 0.0
        %486 = vmatprep.subr.mxu0 0.0
        %487 = vmatpush1.msra.mxu0 0.0
        %488 = vmatprep.subr.mxu0 0.0
        %489 = vmatpush1.msra.mxu0 0.0
        %490 = vmatprep.subr.mxu0 0.0
        %491 = vmatpush1.msra.mxu0 0.0
        %492 = vmatprep.subr.mxu0 0.0
        %493 = vmatpush1.msra.mxu0 0.0
        %494 = vmatprep.subr.mxu0 0.0
        %495 = vmatpush1.msra.mxu0 0.0
        %496 = vmatprep.subr.mxu0 0.0
        %497 = vmatpush1.msra.mxu0 0.0
        %498 = vmatprep.subr.mxu0 0.0
        %499 = vmatpush1.msra.mxu0 0.0
        %500 = vmatprep.subr.mxu0 0.0
        %501 = vmatpush1.msra.mxu0 0.0
        %502 = vmatprep.subr.mxu0 0.0
        %503 = vmatpush1.msra.mxu0 0.0
        %504 = vmatprep.mubr.f32.mxu0 0.0
        %505 = vmatmul.mubr.f32.gmra.mrb[0].mxu0 %v435
        %v506 = vpop.f32.mrb[0].mxu0
        %v507 = vadd.f32 %v427, %v506
        %v508 = vpop.f32.mrb[0].mxu0
        %v509 = vadd.f32 %v427, %v508
        %510 = vmatprep.mubr.f32.mxu0 0.0
        %511 = vmatmul.mubr.f32.gmra.mrb[0].mxu0 %v438
        %v512 = vpop.f32.mrb[0].mxu0
        %v513 = vadd.f32 %v432, %v512
        %v514 = vpop.f32.mrb[0].mxu0
        %v515 = vadd.f32 %v432, %v514
        %516 = vdwg.mxu0
        %517 = vxpose.xlu0.b32.start [1/16] %v417, 128
        %518 = vxpose.xlu0.b32.cont [2/16] 0.0, 128
        %519 = vxpose.xlu0.b32.cont [3/16] 0.0, 128
        %520 = vxpose.xlu0.b32.cont [4/16] 0.0, 128
        %521 = vxpose.xlu0.b32.cont [5/16] 0.0, 128
        %522 = vxpose.xlu0.b32.cont [6/16] 0.0, 128
        %523 = vxpose.xlu0.b32.cont [7/16] 0.0, 128
        %524 = vxpose.xlu0.b32.cont [8/16] 0.0, 128
        %525 = vxpose.xlu0.b32.cont [9/16] 0.0, 128
        %526 = vxpose.xlu0.b32.cont [10/16] 0.0, 128
        %527 = vxpose.xlu0.b32.cont [11/16] 0.0, 128
        %528 = vxpose.xlu0.b32.cont [12/16] 0.0, 128
        %529 = vxpose.xlu0.b32.cont [13/16] 0.0, 128
        %530 = vxpose.xlu0.b32.cont [14/16] 0.0, 128
        %531 = vxpose.xlu0.b32.cont [15/16] 0.0, 128
        %532 = vxpose.xlu0.b32.end [16/16] 0.0, 128
        %v533 = vpop.trf.xlu0
        %v534 = vpop.trf.xlu0
        %v535 = vpop.trf.xlu0
        %v536 = vpop.trf.xlu0
        %v537 = vpop.trf.xlu0
        %v538 = vpop.trf.xlu0
        %v539 = vpop.trf.xlu0
        %v540 = vpop.trf.xlu0
        %v541 = vpop.trf.xlu0
        %v542 = vpop.trf.xlu0
        %v543 = vpop.trf.xlu0
        %v544 = vpop.trf.xlu0
        %v545 = vpop.trf.xlu0
        %v546 = vpop.trf.xlu0
        %v547 = vpop.trf.xlu0
        %v548 = vpop.trf.xlu0
        %vm549 = vcmask 64512
        %v551 = vsel %vm549, %v533, 0
        %v554 = vsel %vm549, %v534, 0
        %v557 = vsel %vm549, %v535, 0
        %v560 = vsel %vm549, %v536, 0
        %v563 = vsel %vm549, %v537, 0
        %v566 = vsel %vm549, %v538, 0
        %v569 = vsel %vm549, %v539, 0
        %v572 = vsel %vm549, %v540, 0
        %v575 = vsel %vm549, %v541, 0
        %v578 = vsel %vm549, %v542, 0
        %v581 = vsel %vm549, %v543, 0
        %v584 = vsel %vm549, %v544, 0
        %v587 = vsel %vm549, %v545, 0
        %v590 = vsel %vm549, %v546, 0
        %v593 = vsel %vm549, %v547, 0
        %v596 = vsel %vm549, %v548, 0
        %598 = vmatprep.subr.mxu0 %v509
        %599 = vmatpush1.msra.mxu0 %v507
        %600 = vmatprep.subr.mxu0 0.0
        %601 = vmatpush1.msra.mxu0 0.0
        %602 = vmatprep.subr.mxu0 0.0
        %603 = vmatpush1.msra.mxu0 0.0
        %604 = vmatprep.subr.mxu0 0.0
        %605 = vmatpush1.msra.mxu0 0.0
        %606 = vmatprep.subr.mxu0 0.0
        %607 = vmatpush1.msra.mxu0 0.0
        %608 = vmatprep.subr.mxu0 0.0
        %609 = vmatpush1.msra.mxu0 0.0
        %610 = vmatprep.subr.mxu0 0.0
        %611 = vmatpush1.msra.mxu0 0.0
        %612 = vmatprep.subr.mxu0 0.0
        %613 = vmatpush1.msra.mxu0 0.0
        %614 = vmatprep.subr.mxu0 0.0
        %615 = vmatpush1.msra.mxu0 0.0
        %616 = vmatprep.subr.mxu0 0.0
        %617 = vmatpush1.msra.mxu0 0.0
        %618 = vmatprep.subr.mxu0 0.0
        %619 = vmatpush1.msra.mxu0 0.0
        %620 = vmatprep.subr.mxu0 0.0
        %621 = vmatpush1.msra.mxu0 0.0
        %622 = vmatprep.subr.mxu0 0.0
        %623 = vmatpush1.msra.mxu0 0.0
        %624 = vmatprep.subr.mxu0 0.0
        %625 = vmatpush1.msra.mxu0 0.0
        %626 = vmatprep.subr.mxu0 0.0
        %627 = vmatpush1.msra.mxu0 0.0
        %628 = vmatprep.subr.mxu0 0.0
        %629 = vmatpush1.msra.mxu0 0.0
        %630 = vmatprep.subr.mxu0 0.0
        %631 = vmatpush1.msra.mxu0 0.0
        %632 = vmatprep.subr.mxu0 0.0
        %633 = vmatpush1.msra.mxu0 0.0
        %634 = vmatprep.subr.mxu0 0.0
        %635 = vmatpush1.msra.mxu0 0.0
        %636 = vmatprep.subr.mxu0 0.0
        %637 = vmatpush1.msra.mxu0 0.0
        %638 = vmatprep.subr.mxu0 0.0
        %639 = vmatpush1.msra.mxu0 0.0
        %640 = vmatprep.subr.mxu0 0.0
        %641 = vmatpush1.msra.mxu0 0.0
        %642 = vmatprep.subr.mxu0 0.0
        %643 = vmatpush1.msra.mxu0 0.0
        %644 = vmatprep.subr.mxu0 0.0
        %645 = vmatpush1.msra.mxu0 0.0
        %646 = vmatprep.subr.mxu0 0.0
        %647 = vmatpush1.msra.mxu0 0.0
        %648 = vmatprep.subr.mxu0 0.0
        %649 = vmatpush1.msra.mxu0 0.0
        %650 = vmatprep.subr.mxu0 0.0
        %651 = vmatpush1.msra.mxu0 0.0
        %652 = vmatprep.subr.mxu0 0.0
        %653 = vmatpush1.msra.mxu0 0.0
        %654 = vmatprep.subr.mxu0 0.0
        %655 = vmatpush1.msra.mxu0 0.0
        %656 = vmatprep.subr.mxu0 0.0
        %657 = vmatpush1.msra.mxu0 0.0
        %658 = vmatprep.subr.mxu0 0.0
        %659 = vmatpush1.msra.mxu0 0.0
        %660 = vmatprep.subr.mxu0 0.0
        %661 = vmatpush1.msra.mxu0 0.0
        %662 = vmatprep.mubr.f32.mxu0 0.0
        %663 = vmatmul.mubr.f32.gmra.mrb[0].mxu0 %v551
        %v664 = vpop.f32.mrb[0].mxu0
        %v665 = vadd.f32 0.0, %v664
        %v666 = vpop.f32.mrb[0].mxu0
        %v667 = vadd.f32 0.0, %v666
        %668 = vmatprep.mubr.f32.mxu0 0.0
        %669 = vmatmul.mubr.f32.gmra.mrb[0].mxu0 %v554
        %v670 = vpop.f32.mrb[0].mxu0
        %v671 = vadd.f32 0.0, %v670
        %v672 = vpop.f32.mrb[0].mxu0
        %v673 = vadd.f32 0.0, %v672
        %674 = vmatprep.mubr.f32.mxu0 0.0
        %675 = vmatmul.mubr.f32.gmra.mrb[0].mxu0 %v557
        %v676 = vpop.f32.mrb[0].mxu0
        %v677 = vadd.f32 0.0, %v676
        %v678 = vpop.f32.mrb[0].mxu0
        %v679 = vadd.f32 0.0, %v678
        %680 = vmatprep.mubr.f32.mxu0 0.0
        %681 = vmatmul.mubr.f32.gmra.mrb[0].mxu0 %v560
        %v682 = vpop.f32.mrb[0].mxu0
        %v683 = vadd.f32 0.0, %v682
        %v684 = vpop.f32.mrb[0].mxu0
        %v685 = vadd.f32 0.0, %v684
        %686 = vmatprep.mubr.f32.mxu0 0.0
        %687 = vmatmul.mubr.f32.gmra.mrb[0].mxu0 %v563
        %v688 = vpop.f32.mrb[0].mxu0
        %v689 = vadd.f32 0.0, %v688
        %v690 = vpop.f32.mrb[0].mxu0
        %v691 = vadd.f32 0.0, %v690
        %692 = vmatprep.mubr.f32.mxu0 0.0
        %693 = vmatmul.mubr.f32.gmra.mrb[0].mxu0 %v566
        %v694 = vpop.f32.mrb[0].mxu0
        %v695 = vadd.f32 0.0, %v694
        %v696 = vpop.f32.mrb[0].mxu0
        %v697 = vadd.f32 0.0, %v696
        %698 = vmatprep.mubr.f32.mxu0 0.0
        %699 = vmatmul.mubr.f32.gmra.mrb[0].mxu0 %v569
        %v700 = vpop.f32.mrb[0].mxu0
        %v701 = vadd.f32 0.0, %v700
        %v702 = vpop.f32.mrb[0].mxu0
        %v703 = vadd.f32 0.0, %v702
        %704 = vmatprep.mubr.f32.mxu0 0.0
        %705 = vmatmul.mubr.f32.gmra.mrb[0].mxu0 %v572
        %v706 = vpop.f32.mrb[0].mxu0
        %v707 = vadd.f32 0.0, %v706
        %v708 = vpop.f32.mrb[0].mxu0
        %v709 = vadd.f32 0.0, %v708
        %710 = vmatprep.mubr.f32.mxu0 0.0
        %711 = vmatmul.mubr.f32.gmra.mrb[0].mxu0 %v575
        %v712 = vpop.f32.mrb[0].mxu0
        %v713 = vadd.f32 0.0, %v712
        %v714 = vpop.f32.mrb[0].mxu0
        %v715 = vadd.f32 0.0, %v714
        %716 = vmatprep.mubr.f32.mxu0 0.0
        %717 = vmatmul.mubr.f32.gmra.mrb[0].mxu0 %v578
        %v718 = vpop.f32.mrb[0].mxu0
        %v719 = vadd.f32 0.0, %v718
        %v720 = vpop.f32.mrb[0].mxu0
        %v721 = vadd.f32 0.0, %v720
        %722 = vmatprep.mubr.f32.mxu0 0.0
        %723 = vmatmul.mubr.f32.gmra.mrb[0].mxu0 %v581
        %v724 = vpop.f32.mrb[0].mxu0
        %v725 = vadd.f32 0.0, %v724
        %v726 = vpop.f32.mrb[0].mxu0
        %v727 = vadd.f32 0.0, %v726
        %728 = vmatprep.mubr.f32.mxu0 0.0
        %729 = vmatmul.mubr.f32.gmra.mrb[0].mxu0 %v584
        %v730 = vpop.f32.mrb[0].mxu0
        %v731 = vadd.f32 0.0, %v730
        %v732 = vpop.f32.mrb[0].mxu0
        %v733 = vadd.f32 0.0, %v732
        %734 = vmatprep.mubr.f32.mxu0 0.0
        %735 = vmatmul.mubr.f32.gmra.mrb[0].mxu0 %v587
        %v736 = vpop.f32.mrb[0].mxu0
        %v737 = vadd.f32 0.0, %v736
        %v738 = vpop.f32.mrb[0].mxu0
        %v739 = vadd.f32 0.0, %v738
        %740 = vmatprep.mubr.f32.mxu0 0.0
        %741 = vmatmul.mubr.f32.gmra.mrb[0].mxu0 %v590
        %v742 = vpop.f32.mrb[0].mxu0
        %v743 = vadd.f32 0.0, %v742
        %v744 = vpop.f32.mrb[0].mxu0
        %v745 = vadd.f32 0.0, %v744
        %746 = vmatprep.mubr.f32.mxu0 0.0
        %747 = vmatmul.mubr.f32.gmra.mrb[0].mxu0 %v593
        %v748 = vpop.f32.mrb[0].mxu0
        %v749 = vadd.f32 0.0, %v748
        %v750 = vpop.f32.mrb[0].mxu0
        %v751 = vadd.f32 0.0, %v750
        %752 = vmatprep.mubr.f32.mxu0 0.0
        %753 = vmatmul.mubr.f32.gmra.mrb[0].mxu0 %v596
        %v754 = vpop.f32.mrb[0].mxu0
        %v755 = vadd.f32 0.0, %v754
        %v756 = vpop.f32.mrb[0].mxu0
        %v757 = vadd.f32 0.0, %v756
        %758 = vdwg.mxu0
        %v759 = vmax.f32 %v665, %v667
        %760 = vmax.xlane.f32.xlu0 %v759
        %v761 = vpop.xlane.xlu0 %760
        %v762 = vmax.f32 %v671, %v673
        %763 = vmax.xlane.f32.xlu0 %v762
        %v764 = vpop.xlane.xlu0 %763
        %v765 = vmax.f32 %v677, %v679
        %766 = vmax.xlane.f32.xlu0 %v765
        %v767 = vpop.xlane.xlu0 %766
        %v768 = vmax.f32 %v683, %v685
        %769 = vmax.xlane.f32.xlu0 %v768
        %v770 = vpop.xlane.xlu0 %769
        %v771 = vmax.f32 %v689, %v691
        %772 = vmax.xlane.f32.xlu0 %v771
        %v773 = vpop.xlane.xlu0 %772
        %v774 = vmax.f32 %v695, %v697
        %775 = vmax.xlane.f32.xlu0 %v774
        %v776 = vpop.xlane.xlu0 %775
        %v777 = vmax.f32 %v701, %v703
        %778 = vmax.xlane.f32.xlu0 %v777
        %v779 = vpop.xlane.xlu0 %778
        %v780 = vmax.f32 %v707, %v709
        %781 = vmax.xlane.f32.xlu0 %v780
        %v782 = vpop.xlane.xlu0 %781
        %v783 = vmax.f32 %v713, %v715
        %784 = vmax.xlane.f32.xlu0 %v783
        %v785 = vpop.xlane.xlu0 %784
        %v786 = vmax.f32 %v719, %v721
        %787 = vmax.xlane.f32.xlu0 %v786
        %v788 = vpop.xlane.xlu0 %787
        %v789 = vmax.f32 %v725, %v727
        %790 = vmax.xlane.f32.xlu0 %v789
        %v791 = vpop.xlane.xlu0 %790
        %v792 = vmax.f32 %v731, %v733
        %793 = vmax.xlane.f32.xlu0 %v792
        %v794 = vpop.xlane.xlu0 %793
        %v795 = vmax.f32 %v737, %v739
        %796 = vmax.xlane.f32.xlu0 %v795
        %v797 = vpop.xlane.xlu0 %796
        %v798 = vmax.f32 %v743, %v745
        %799 = vmax.xlane.f32.xlu0 %v798
        %v800 = vpop.xlane.xlu0 %799
        %v801 = vmax.f32 %v749, %v751
        %802 = vmax.xlane.f32.xlu0 %v801
        %v803 = vpop.xlane.xlu0 %802
        %v804 = vmax.f32 %v755, %v757
        %805 = vmax.xlane.f32.xlu0 %v804
        %v806 = vpop.xlane.xlu0 %805
        %v807 = vsub.f32 %v665, %v761
        %v808 = vsub.f32 %v667, %v761
        %v809 = vsub.f32 %v671, %v764
        %v810 = vsub.f32 %v673, %v764
        %v811 = vsub.f32 %v677, %v767
        %v812 = vsub.f32 %v679, %v767
        %v813 = vsub.f32 %v683, %v770
        %v814 = vsub.f32 %v685, %v770
        %v815 = vsub.f32 %v689, %v773
        %v816 = vsub.f32 %v691, %v773
        %v817 = vsub.f32 %v695, %v776
        %v818 = vsub.f32 %v697, %v776
        %v819 = vsub.f32 %v701, %v779
        %v820 = vsub.f32 %v703, %v779
        %v821 = vsub.f32 %v707, %v782
        %v822 = vsub.f32 %v709, %v782
        %v823 = vsub.f32 %v713, %v785
        %v824 = vsub.f32 %v715, %v785
        %v825 = vsub.f32 %v719, %v788
        %v826 = vsub.f32 %v721, %v788
        %v827 = vsub.f32 %v725, %v791
        %v828 = vsub.f32 %v727, %v791
        %v829 = vsub.f32 %v731, %v794
        %v830 = vsub.f32 %v733, %v794
        %v831 = vsub.f32 %v737, %v797
        %v832 = vsub.f32 %v739, %v797
        %v833 = vsub.f32 %v743, %v800
        %v834 = vsub.f32 %v745, %v800
        %v835 = vsub.f32 %v749, %v803
        %v836 = vsub.f32 %v751, %v803
        %v837 = vsub.f32 %v755, %v806
        %v838 = vsub.f32 %v757, %v806
        %v839 = vmul.f32 %v807, 1.442695
        %v840 = vpow.pop %v839
        %v841 = vmul.f32 %v808, 1.442695
        %v842 = vpow.pop %v841
        %v843 = vmul.f32 %v809, 1.442695
        %v844 = vpow.pop %v843
        %v845 = vmul.f32 %v810, 1.442695
        %v846 = vpow.pop %v845
        %v847 = vmul.f32 %v811, 1.442695
        %v848 = vpow.pop %v847
        %v849 = vmul.f32 %v812, 1.442695
        %v850 = vpow.pop %v849
        %v851 = vmul.f32 %v813, 1.442695
        %v852 = vpow.pop %v851
        %v853 = vmul.f32 %v814, 1.442695
        %v854 = vpow.pop %v853
        %v855 = vmul.f32 %v815, 1.442695
        %v856 = vpow.pop %v855
        %v857 = vmul.f32 %v816, 1.442695
        %v858 = vpow.pop %v857
        %v859 = vmul.f32 %v817, 1.442695
        %v860 = vpow.pop %v859
        %v861 = vmul.f32 %v818, 1.442695
        %v862 = vpow.pop %v861
        %v863 = vmul.f32 %v819, 1.442695
        %v864 = vpow.pop %v863
        %v865 = vmul.f32 %v820, 1.442695
        %v866 = vpow.pop %v865
        %v867 = vmul.f32 %v821, 1.442695
        %v868 = vpow.pop %v867
        %v869 = vmul.f32 %v822, 1.442695
        %v870 = vpow.pop %v869
        %v871 = vmul.f32 %v823, 1.442695
        %v872 = vpow.pop %v871
        %v873 = vmul.f32 %v824, 1.442695
        %v874 = vpow.pop %v873
        %v875 = vmul.f32 %v825, 1.442695
        %v876 = vpow.pop %v875
        %v877 = vmul.f32 %v826, 1.442695
        %v878 = vpow.pop %v877
        %v879 = vmul.f32 %v827, 1.442695
        %v880 = vpow.pop %v879
        %v881 = vmul.f32 %v828, 1.442695
        %v882 = vpow.pop %v881
        %v883 = vmul.f32 %v829, 1.442695
        %v884 = vpow.pop %v883
        %v885 = vmul.f32 %v830, 1.442695
        %v886 = vpow.pop %v885
        %v887 = vmul.f32 %v831, 1.442695
        %v888 = vpow.pop %v887
        %v889 = vmul.f32 %v832, 1.442695
        %v890 = vpow.pop %v889
        %v891 = vmul.f32 %v833, 1.442695
        %v892 = vpow.pop %v891
        %v893 = vmul.f32 %v834, 1.442695
        %v894 = vpow.pop %v893
        %v895 = vmul.f32 %v835, 1.442695
        %v896 = vpow.pop %v895
        %v897 = vmul.f32 %v836, 1.442695
        %v898 = vpow.pop %v897
        %v899 = vmul.f32 %v837, 1.442695
        %v900 = vpow.pop %v899
        %v901 = vmul.f32 %v838, 1.442695
        %v902 = vpow.pop %v901
        %v903 = vadd.f32 %v840, %v842
        %904 = vadd.xlane.f32.xlu0 %v903
        %v905 = vpop.xlane.xlu0 %904
        %v906 = vadd.f32 %v844, %v846
        %907 = vadd.xlane.f32.xlu0 %v906
        %v908 = vpop.xlane.xlu0 %907
        %v909 = vadd.f32 %v848, %v850
        %910 = vadd.xlane.f32.xlu0 %v909
        %v911 = vpop.xlane.xlu0 %910
        %v912 = vadd.f32 %v852, %v854
        %913 = vadd.xlane.f32.xlu0 %v912
        %v914 = vpop.xlane.xlu0 %913
        %v915 = vadd.f32 %v856, %v858
        %916 = vadd.xlane.f32.xlu0 %v915
        %v917 = vpop.xlane.xlu0 %916
        %v918 = vadd.f32 %v860, %v862
        %919 = vadd.xlane.f32.xlu0 %v918
        %v920 = vpop.xlane.xlu0 %919
        %v921 = vadd.f32 %v864, %v866
        %922 = vadd.xlane.f32.xlu0 %v921
        %v923 = vpop.xlane.xlu0 %922
        %v924 = vadd.f32 %v868, %v870
        %925 = vadd.xlane.f32.xlu0 %v924
        %v926 = vpop.xlane.xlu0 %925
        %v927 = vadd.f32 %v872, %v874
        %928 = vadd.xlane.f32.xlu0 %v927
        %v929 = vpop.xlane.xlu0 %928
        %v930 = vadd.f32 %v876, %v878
        %931 = vadd.xlane.f32.xlu0 %v930
        %v932 = vpop.xlane.xlu0 %931
        %v933 = vadd.f32 %v880, %v882
        %934 = vadd.xlane.f32.xlu0 %v933
        %v935 = vpop.xlane.xlu0 %934
        %v936 = vadd.f32 %v884, %v886
        %937 = vadd.xlane.f32.xlu0 %v936
        %v938 = vpop.xlane.xlu0 %937
        %v939 = vadd.f32 %v888, %v890
        %940 = vadd.xlane.f32.xlu0 %v939
        %v941 = vpop.xlane.xlu0 %940
        %v942 = vadd.f32 %v892, %v894
        %943 = vadd.xlane.f32.xlu0 %v942
        %v944 = vpop.xlane.xlu0 %943
        %v945 = vadd.f32 %v896, %v898
        %946 = vadd.xlane.f32.xlu0 %v945
        %v947 = vpop.xlane.xlu0 %946
        %v948 = vadd.f32 %v900, %v902
        %949 = vadd.xlane.f32.xlu0 %v948
        %v950 = vpop.xlane.xlu0 %949
        %951 = vmatprep.subr.mxu0 %v515
        %952 = vmatpush1.xpose.msra.mxu0 %v513
        %953 = vmatprep.subr.mxu0 0.0
        %954 = vmatpush1.xpose.msra.mxu0 0.0
        %955 = vmatprep.subr.mxu0 0.0
        %956 = vmatpush1.xpose.msra.mxu0 0.0
        %957 = vmatprep.subr.mxu0 0.0
        %958 = vmatpush1.xpose.msra.mxu0 0.0
        %959 = vmatprep.subr.mxu0 0.0
        %960 = vmatpush1.xpose.msra.mxu0 0.0
        %961 = vmatprep.subr.mxu0 0.0
        %962 = vmatpush1.xpose.msra.mxu0 0.0
        %963 = vmatprep.subr.mxu0 0.0
        %964 = vmatpush1.xpose.msra.mxu0 0.0
        %965 = vmatprep.subr.mxu0 0.0
        %966 = vmatpush1.xpose.msra.mxu0 0.0
        %967 = vmatprep.subr.mxu0 0.0
        %968 = vmatpush1.xpose.msra.mxu0 0.0
        %969 = vmatprep.subr.mxu0 0.0
        %970 = vmatpush1.xpose.msra.mxu0 0.0
        %971 = vmatprep.subr.mxu0 0.0
        %972 = vmatpush1.xpose.msra.mxu0 0.0
        %973 = vmatprep.subr.mxu0 0.0
        %974 = vmatpush1.xpose.msra.mxu0 0.0
        %975 = vmatprep.subr.mxu0 0.0
        %976 = vmatpush1.xpose.msra.mxu0 0.0
        %977 = vmatprep.subr.mxu0 0.0
        %978 = vmatpush1.xpose.msra.mxu0 0.0
        %979 = vmatprep.subr.mxu0 0.0
        %980 = vmatpush1.xpose.msra.mxu0 0.0
        %981 = vmatprep.subr.mxu0 0.0
        %982 = vmatpush1.xpose.msra.mxu0 0.0
        %983 = vmatprep.subr.mxu0 0.0
        %984 = vmatpush1.xpose.msra.mxu0 0.0
        %985 = vmatprep.subr.mxu0 0.0
        %986 = vmatpush1.xpose.msra.mxu0 0.0
        %987 = vmatprep.subr.mxu0 0.0
        %988 = vmatpush1.xpose.msra.mxu0 0.0
        %989 = vmatprep.subr.mxu0 0.0
        %990 = vmatpush1.xpose.msra.mxu0 0.0
        %991 = vmatprep.subr.mxu0 0.0
        %992 = vmatpush1.xpose.msra.mxu0 0.0
        %993 = vmatprep.subr.mxu0 0.0
        %994 = vmatpush1.xpose.msra.mxu0 0.0
        %995 = vmatprep.subr.mxu0 0.0
        %996 = vmatpush1.xpose.msra.mxu0 0.0
        %997 = vmatprep.subr.mxu0 0.0
        %998 = vmatpush1.xpose.msra.mxu0 0.0
        %999 = vmatprep.subr.mxu0 0.0
        %1000 = vmatpush1.xpose.msra.mxu0 0.0
        %1001 = vmatprep.subr.mxu0 0.0
        %1002 = vmatpush1.xpose.msra.mxu0 0.0
        %1003 = vmatprep.subr.mxu0 0.0
        %1004 = vmatpush1.xpose.msra.mxu0 0.0
        %1005 = vmatprep.subr.mxu0 0.0
        %1006 = vmatpush1.xpose.msra.mxu0 0.0
        %1007 = vmatprep.subr.mxu0 0.0
        %1008 = vmatpush1.xpose.msra.mxu0 0.0
        %1009 = vmatprep.subr.mxu0 0.0
        %1010 = vmatpush1.xpose.msra.mxu0 0.0
        %1011 = vmatprep.subr.mxu0 0.0
        %1012 = vmatpush1.xpose.msra.mxu0 0.0
        %1013 = vmatprep.subr.mxu0 0.0
        %1014 = vmatpush1.xpose.msra.mxu0 0.0
        %1015 = vmatprep.mubr.f32.mxu0 %v842
        %1016 = vmatmul.mubr.f32.gmra.mrb[0].mxu0 %v840
        %v1017 = vpop.f32.mrb[0].mxu0
        %v1018 = vadd.f32 0.0, %v1017
        %v1019 = vpop.f32.mrb[0].mxu0
        %1020 = vmatprep.mubr.f32.mxu0 %v846
        %1021 = vmatmul.mubr.f32.gmra.mrb[0].mxu0 %v844
        %v1022 = vpop.f32.mrb[0].mxu0
        %v1023 = vadd.f32 0.0, %v1022
        %v1024 = vpop.f32.mrb[0].mxu0
        %1025 = vmatprep.mubr.f32.mxu0 %v850
        %1026 = vmatmul.mubr.f32.gmra.mrb[0].mxu0 %v848
        %v1027 = vpop.f32.mrb[0].mxu0
        %v1028 = vadd.f32 0.0, %v1027
        %v1029 = vpop.f32.mrb[0].mxu0
        %1030 = vmatprep.mubr.f32.mxu0 %v854
        %1031 = vmatmul.mubr.f32.gmra.mrb[0].mxu0 %v852
        %v1032 = vpop.f32.mrb[0].mxu0
        %v1033 = vadd.f32 0.0, %v1032
        %v1034 = vpop.f32.mrb[0].mxu0
        %1035 = vmatprep.mubr.f32.mxu0 %v858
        %1036 = vmatmul.mubr.f32.gmra.mrb[0].mxu0 %v856
        %v1037 = vpop.f32.mrb[0].mxu0
        %v1038 = vadd.f32 0.0, %v1037
        %v1039 = vpop.f32.mrb[0].mxu0
        %1040 = vmatprep.mubr.f32.mxu0 %v862
        %1041 = vmatmul.mubr.f32.gmra.mrb[0].mxu0 %v860
        %v1042 = vpop.f32.mrb[0].mxu0
        %v1043 = vadd.f32 0.0, %v1042
        %v1044 = vpop.f32.mrb[0].mxu0
        %1045 = vmatprep.mubr.f32.mxu0 %v866
        %1046 = vmatmul.mubr.f32.gmra.mrb[0].mxu0 %v864
        %v1047 = vpop.f32.mrb[0].mxu0
        %v1048 = vadd.f32 0.0, %v1047
        %v1049 = vpop.f32.mrb[0].mxu0
        %1050 = vmatprep.mubr.f32.mxu0 %v870
        %1051 = vmatmul.mubr.f32.gmra.mrb[0].mxu0 %v868
        %v1052 = vpop.f32.mrb[0].mxu0
        %v1053 = vadd.f32 0.0, %v1052
        %v1054 = vpop.f32.mrb[0].mxu0
        %1055 = vmatprep.mubr.f32.mxu0 %v874
        %1056 = vmatmul.mubr.f32.gmra.mrb[0].mxu0 %v872
        %v1057 = vpop.f32.mrb[0].mxu0
        %v1058 = vadd.f32 0.0, %v1057
        %v1059 = vpop.f32.mrb[0].mxu0
        %1060 = vmatprep.mubr.f32.mxu0 %v878
        %1061 = vmatmul.mubr.f32.gmra.mrb[0].mxu0 %v876
        %v1062 = vpop.f32.mrb[0].mxu0
        %v1063 = vadd.f32 0.0, %v1062
        %v1064 = vpop.f32.mrb[0].mxu0
        %1065 = vmatprep.mubr.f32.mxu0 %v882
        %1066 = vmatmul.mubr.f32.gmra.mrb[0].mxu0 %v880
        %v1067 = vpop.f32.mrb[0].mxu0
        %v1068 = vadd.f32 0.0, %v1067
        %v1069 = vpop.f32.mrb[0].mxu0
        %1070 = vmatprep.mubr.f32.mxu0 %v886
        %1071 = vmatmul.mubr.f32.gmra.mrb[0].mxu0 %v884
        %v1072 = vpop.f32.mrb[0].mxu0
        %v1073 = vadd.f32 0.0, %v1072
        %v1074 = vpop.f32.mrb[0].mxu0
        %1075 = vmatprep.mubr.f32.mxu0 %v890
        %1076 = vmatmul.mubr.f32.gmra.mrb[0].mxu0 %v888
        %v1077 = vpop.f32.mrb[0].mxu0
        %v1078 = vadd.f32 0.0, %v1077
        %v1079 = vpop.f32.mrb[0].mxu0
        %1080 = vmatprep.mubr.f32.mxu0 %v894
        %1081 = vmatmul.mubr.f32.gmra.mrb[0].mxu0 %v892
        %v1082 = vpop.f32.mrb[0].mxu0
        %v1083 = vadd.f32 0.0, %v1082
        %v1084 = vpop.f32.mrb[0].mxu0
        %1085 = vmatprep.mubr.f32.mxu0 %v898
        %1086 = vmatmul.mubr.f32.gmra.mrb[0].mxu0 %v896
        %v1087 = vpop.f32.mrb[0].mxu0
        %v1088 = vadd.f32 0.0, %v1087
        %v1089 = vpop.f32.mrb[0].mxu0
        %1090 = vmatprep.mubr.f32.mxu0 %v902
        %1091 = vmatmul.mubr.f32.gmra.mrb[0].mxu0 %v900
        %v1092 = vpop.f32.mrb[0].mxu0
        %v1093 = vadd.f32 0.0, %v1092
        %v1094 = vpop.f32.mrb[0].mxu0
        %1095 = vdwg.mxu0
        %v1096 = vrcp.pop %v905
        %v1097 = vmul.f32 1.0, %v1096
        %v1098 = vrcp.pop %v908
        %v1099 = vmul.f32 1.0, %v1098
        %v1100 = vrcp.pop %v911
        %v1101 = vmul.f32 1.0, %v1100
        %v1102 = vrcp.pop %v914
        %v1103 = vmul.f32 1.0, %v1102
        %v1104 = vrcp.pop %v917
        %v1105 = vmul.f32 1.0, %v1104
        %v1106 = vrcp.pop %v920
        %v1107 = vmul.f32 1.0, %v1106
        %v1108 = vrcp.pop %v923
        %v1109 = vmul.f32 1.0, %v1108
        %v1110 = vrcp.pop %v926
        %v1111 = vmul.f32 1.0, %v1110
        %v1112 = vrcp.pop %v929
        %v1113 = vmul.f32 1.0, %v1112
        %v1114 = vrcp.pop %v932
        %v1115 = vmul.f32 1.0, %v1114
        %v1116 = vrcp.pop %v935
        %v1117 = vmul.f32 1.0, %v1116
        %v1118 = vrcp.pop %v938
        %v1119 = vmul.f32 1.0, %v1118
        %v1120 = vrcp.pop %v941
        %v1121 = vmul.f32 1.0, %v1120
        %v1122 = vrcp.pop %v944
        %v1123 = vmul.f32 1.0, %v1122
        %v1124 = vrcp.pop %v947
        %v1125 = vmul.f32 1.0, %v1124
        %v1126 = vrcp.pop %v950
        %v1127 = vmul.f32 1.0, %v1126
        %v1128 = vmul.f32 %v1018, %v1097
        %v1129 = vmul.f32 %v1023, %v1099
        %v1130 = vmul.f32 %v1028, %v1101
        %v1131 = vmul.f32 %v1033, %v1103
        %v1132 = vmul.f32 %v1038, %v1105
        %v1133 = vmul.f32 %v1043, %v1107
        %v1134 = vmul.f32 %v1048, %v1109
        %v1135 = vmul.f32 %v1053, %v1111
        %v1136 = vmul.f32 %v1058, %v1113
        %v1137 = vmul.f32 %v1063, %v1115
        %v1138 = vmul.f32 %v1068, %v1117
        %v1139 = vmul.f32 %v1073, %v1119
        %v1140 = vmul.f32 %v1078, %v1121
        %v1141 = vmul.f32 %v1083, %v1123
        %v1142 = vmul.f32 %v1088, %v1125
        %v1143 = vmul.f32 %v1093, %v1127
        %1144 = vxpose.xlu0.b32.start [1/16] %v1128, 128
        %1145 = vxpose.xlu0.b32.cont [2/16] %v1129, 128
        %1146 = vxpose.xlu0.b32.cont [3/16] %v1130, 128
        %1147 = vxpose.xlu0.b32.cont [4/16] %v1131, 128
        %1148 = vxpose.xlu0.b32.cont [5/16] %v1132, 128
        %1149 = vxpose.xlu0.b32.cont [6/16] %v1133, 128
        %1150 = vxpose.xlu0.b32.cont [7/16] %v1134, 128
        %1151 = vxpose.xlu0.b32.cont [8/16] %v1135, 128
        %1152 = vxpose.xlu0.b32.cont [9/16] %v1136, 128
        %1153 = vxpose.xlu0.b32.cont [10/16] %v1137, 128
        %1154 = vxpose.xlu0.b32.cont [11/16] %v1138, 128
        %1155 = vxpose.xlu0.b32.cont [12/16] %v1139, 128
        %1156 = vxpose.xlu0.b32.cont [13/16] %v1140, 128
        %1157 = vxpose.xlu0.b32.cont [14/16] %v1141, 128
        %1158 = vxpose.xlu0.b32.cont [15/16] %v1142, 128
        %1159 = vxpose.xlu0.b32.end [16/16] %v1143, 128
        %v1160 = vpop.trf.xlu0
        %v1161 = vpop.trf.xlu0
        %v1162 = vpop.trf.xlu0
        %v1163 = vpop.trf.xlu0
        %v1164 = vpop.trf.xlu0
        %v1165 = vpop.trf.xlu0
        %v1166 = vpop.trf.xlu0
        %v1167 = vpop.trf.xlu0
        %v1168 = vpop.trf.xlu0
        %v1169 = vpop.trf.xlu0
        %v1170 = vpop.trf.xlu0
        %v1171 = vpop.trf.xlu0
        %v1172 = vpop.trf.xlu0
        %v1173 = vpop.trf.xlu0
        %v1174 = vpop.trf.xlu0
        %v1175 = vpop.trf.xlu0
        %1176 = vst [vmem:[%s326] sm:$0xf] %v1160
        %s1177 = sand.u32 %s186, 1
        %s1178 = scalar_lea.sflag [#allocation4], %s1177
        %s1179 = sand.u32 %s186, 1
        %s1180 = smul.addr %s1179, 4
        %s1181 = scalar_lea.vmem [#allocation7], %s1180
        // Predicated region
        $region53: #{tpu_custom_call.1} parent=43 // pred_check
          %p1182 = pneg %p196
        $region54: #{tpu_custom_call.1} parent=43 // pred_check_branch
          %1184 = sbr.rel (%p1182) target = $region56
        $region55: #{tpu_custom_call.1} parent=43 // pred_region
          %s1186 = ssub.s32 64, 64
          %1187 = vsyncadd %s1178, %s1186
          %s1188 = smul.addr %s30, 2
          %s1189 = sadd.s32 %s31, %s1188
          %s1190 = smul.addr %s1189, 64
          %s1191 = scalar_lea.hbm %s6, %s1190
          %s1193 = sshll.u32 %s1181, 4
          %s1194 = int_to_ptr.vmem [resolvable:$true] %s1193
          %1196 = dma.vmem_to_hbm [thread:$0]  %s1194, 64, %s1191, %s1178
        $region56: #{tpu_custom_call.1} parent=43 // pred_fallthru
          _
      $region44: #{tpu_custom_call.1} parent=5 // pred_fallthru
        _
      %p1197 = scmp.le.s32.totalorder 2, %s21
      // Predicated region
      $region57: #{tpu_custom_call.1} parent=5 // pred_check
        %p1198 = pneg %p1197
      $region58: #{tpu_custom_call.1} parent=5 // pred_check_branch
        %1200 = sbr.rel (%p1198) target = $region60
      $region59: #{tpu_custom_call.1} parent=5 // pred_region
        %s1201 = ssub.s32 %s21, 2
        // Predicated region
        $region61: #{tpu_custom_call.1} parent=59 // pred_check
          %p1202 = pneg %p202
        $region62: #{tpu_custom_call.1} parent=59 // pred_check_branch
          %1204 = sbr.rel (%p1202) target = $region64
        $region63: #{tpu_custom_call.1} parent=59 // pred_region
          %s1205 = sand.u32 %s187, 1
          %s1206 = scalar_lea.sflag [#allocation4], %s1205
          %s1207 = sand.u32 %s187, 1
          %s1208 = smul.addr %s1207, 4
          %s1209 = scalar_lea.vmem [#allocation7], %s1208
          %1210 = dma.done %s1206, 64
        $region64: #{tpu_custom_call.1} parent=59 // pred_fallthru
          _
      $region60: #{tpu_custom_call.1} parent=5 // pred_fallthru
        _
    $region6: #{tpu_custom_call.1} parent=1 // loop_footer
      %s25 = sadd.s32 1, %s21
    $region7: #{tpu_custom_call.1} parent=1 // loop_footer_branch
      %20 = sbr.rel target = $region3
    $region8: #{tpu_custom_call.1} parent=1 // loop_exit
      _
    %1211 = vsyncpa [#allocation3], 1
    %s1212 = scalar_lea.sflag [#allocation3], 1
    %1213 = vsyncpa %s1212, 1
    %1214 = vsyncpa [#allocation6], 1
    %s1215 = scalar_lea.sflag [#allocation6], 1
    %1216 = vsyncpa %s1215, 1
    %1217 = vsyncpa [#allocation4], 1
    %s1218 = scalar_lea.sflag [#allocation4], 1
    %1219 = vsyncpa %s1218, 1

</llo_original>
